<compile_context>
chip_gen: v7x
topology: tpu7x:2x2x1
jax: 0.10.0
libtpu: 0.0.40
codegen_flags: <defaults>
</compile_context>

<pallas_src>
import jax
import jax.numpy as jnp
from jax.experimental import pallas as pl
from jax.experimental.pallas import tpu as pltpu


# ----------------------------- fused Pallas kernel ---------------------------

def _fused_forward_kernel(
    x_ref, adj_ref,
    wc0_ref, b0_ref, g0_ref, be0_ref,
    wc1_ref, b1_ref, g1_ref, be1_ref,
    wc2_ref, b2_ref, g2_ref, be2_ref,
    wskip_ref, alpha_ref,
    out_ref,
):
    x = x_ref[...]          # (N, F) f32
    adj = adj_ref[...]      # (N, N) bf16 -- loaded once, reused by all layers

    def sage(h, wc_ref, b_ref):
        # 'mean' neighbor aggregation on the MXU (bf16 inputs, f32 accum).
        neigh = jnp.dot(adj, h.astype(adj.dtype),
                        preferred_element_type=jnp.float32)
        # One MXU call for self + neighbor transform: [h | neigh] @ [[Ws],[Wn]]
        z = jnp.concatenate([h, neigh], axis=-1)
        return (jnp.dot(z, wc_ref[...], preferred_element_type=jnp.float32)
                + b_ref[...])

    def ln_prelu(h, g_ref, be_ref, alpha):
        mean = jnp.mean(h, axis=-1, keepdims=True)
        var = jnp.mean((h - mean) * (h - mean), axis=-1, keepdims=True)
        y = (h - mean) * jax.lax.rsqrt(var + 1e-5) * g_ref[...] + be_ref[...]
        return jnp.where(y >= 0, y, alpha * y)

    # Both skip projections with a single matmul, then static lane slices.
    skips = jnp.dot(x, wskip_ref[...], preferred_element_type=jnp.float32)
    hdim = skips.shape[1] // 2
    x_skip_1 = skips[:, :hdim]
    x_skip_2 = skips[:, hdim:]

    # Dropout(p=0.2) is identity in eval mode.
    h1 = ln_prelu(sage(x, wc0_ref, b0_ref), g0_ref, be0_ref, alpha_ref[0])
    h2 = ln_prelu(sage(h1 + x_skip_1, wc1_ref, b1_ref),
                  g1_ref, be1_ref, alpha_ref[1])
    ret = ln_prelu(sage(h1 + h2 + x_skip_2, wc2_ref, b2_ref),
                   g2_ref, be2_ref, alpha_ref[2])

    out_ref[...] = ret.astype(out_ref.dtype)
    # TODO(synk): for large N, add a ("parallel", ...) row-tile grid (v7x
    # megacore), tile adj over (row, K) with an f32 accumulator + pl.when
    # init/finalize, size tiles for 32 MiB (v7x/v6e) / 16 MiB (v5e) scoped
    # VMEM, and make the final HBM writeback lane-dense (multiple of 128).


# ----------------------------- wrapper ---------------------------------------

def graphsage_gcn_forward(x, adj_norm, p):
    """Fused forward. adj_norm: dense row-normalized adjacency (N, N) f32."""
    N, _ = x.shape
    E = p["ws2"].shape[1]

    # Fold (self, neigh) weights of each layer into one (2*in, out) matrix and
    # both skip projections into one (in, 2*hidden) matrix (done once in XLA).
    wc0 = jnp.concatenate([p["ws0"], p["wn0"]], axis=0)
    wc1 = jnp.concatenate([p["ws1"], p["wn1"]], axis=0)
    wc2 = jnp.concatenate([p["ws2"], p["wn2"]], axis=0)
    wskip = jnp.concatenate([p["wskip0"], p["wskip1"]], axis=1)

    # bf16 adjacency -> native MXU path on v6e/v7x; accumulation stays f32.
    adj_bf16 = adj_norm.astype(jnp.bfloat16)
    alphas = jnp.stack([p["a0"], p["a1"], p["a2"]])          # (3,) PReLU weights

    row = lambda v: v.reshape(1, -1)
    vmem_args = (
        x, adj_bf16,
        wc0, row(p["b0"]), row(p["ln_g0"]), row(p["ln_b0"]),
        wc1, row(p["b1"]), row(p["ln_g1"]), row(p["ln_b1"]),
        wc2, row(p["b2"]), row(p["ln_g2"]), row(p["ln_b2"]),
        wskip,
    )

    def full_spec(a):
        # single-block spec: block == full array
        return pl.BlockSpec(a.shape, lambda: (0,) * a.ndim)

    in_specs = [full_spec(a) for a in vmem_args]
    in_specs.append(pl.BlockSpec(memory_space=pltpu.SMEM))   # PReLU alphas

    return pl.pallas_call(
        _fused_forward_kernel,
        out_shape=jax.ShapeDtypeStruct((N, E), jnp.float32),
        in_specs=in_specs,
        out_specs=pl.BlockSpec((N, E), lambda: (0, 0)),
    )(*vmem_args, alphas)


# ----------------------------- pure-JAX f32 reference ------------------------

def _reference_forward(x, adj_norm, p):
    def sage(h, ws, wn, b):
        return h @ ws + (adj_norm @ h) @ wn + b

    def ln_prelu(h, g, be, a):
        mean = h.mean(-1, keepdims=True)
        var = ((h - mean) ** 2).mean(-1, keepdims=True)
        y = (h - mean) / jnp.sqrt(var + 1e-5) * g + be
        return jnp.where(y >= 0, y, a * y)

    h1 = ln_prelu(sage(x, p["ws0"], p["wn0"], p["b0"]),
                  p["ln_g0"], p["ln_b0"], p["a0"])
    h2 = ln_prelu(sage(h1 + x @ p["wskip0"], p["ws1"], p["wn1"], p["b1"]),
                  p["ln_g1"], p["ln_b1"], p["a1"])
    ret = ln_prelu(sage(h1 + h2 + x @ p["wskip1"], p["ws2"], p["wn2"], p["b2"]),
                   p["ln_g2"], p["ln_b2"], p["a2"])
    return ret


# ----------------------------- main ------------------------------------------

if __name__ == "__main__":
    N = 32               # number of graph nodes
    input_size = 16
    hidden_size = 32
    embedding_size = 16

    key = jax.random.PRNGKey(0)
    keys = jax.random.split(key, 16)

    # deterministic dense graph (no self loops); row-normalize for 'mean' agg.
    adj = (jax.random.uniform(keys[0], (N, N)) < 0.3).astype(jnp.float32)
    adj = adj * (1.0 - jnp.eye(N, dtype=jnp.float32))
    deg = jnp.clip(adj.sum(axis=1, keepdims=True), 1.0, None)
    adj_norm = adj / deg

    x = jax.random.normal(keys[1], (N, input_size), dtype=jnp.float32)

    def w(k, i, o):
        return 0.1 * jax.random.normal(k, (i, o), dtype=jnp.float32)

    dims = [(input_size, hidden_size),
            (hidden_size, hidden_size),
            (hidden_size, embedding_size)]

    params = {}
    ki = 2
    for li, (din, dout) in enumerate(dims):
        params[f"ws{li}"] = w(keys[ki], din, dout); ki += 1   # fc_self^T
        params[f"wn{li}"] = w(keys[ki], din, dout); ki += 1   # fc_neigh^T
        params[f"b{li}"] = jnp.zeros((dout,), jnp.float32)
        params[f"ln_g{li}"] = jnp.ones((dout,), jnp.float32)
        params[f"ln_b{li}"] = jnp.zeros((dout,), jnp.float32)
        params[f"a{li}"] = jnp.array(0.25, jnp.float32)       # PReLU weight
    params["wskip0"] = w(keys[ki], input_size, hidden_size); ki += 1
    params["wskip1"] = w(keys[ki], input_size, hidden_size); ki += 1

    fwd = jax.jit(graphsage_gcn_forward)
    out = jax.block_until_ready(fwd(x, adj_norm, params))

    assert out.shape == (N, embedding_size)
    assert bool(jnp.all(jnp.isfinite(out)))

    # Validate the bf16-aggregation fused kernel against a pure f32 reference.
    ref = _reference_forward(x, adj_norm, params)
    max_err = float(jnp.max(jnp.abs(out - ref)))
    assert max_err < 5e-2, f"mismatch vs f32 reference: {max_err}"

    print("KERNEL_OK")
</pallas_src>

<mosaic_0001>
module attributes {stable_mosaic.version = 11 : i64} {
  func.func @_fused_forward_kernel(%arg0: memref<32x16xf32, #tpu.memory_space<vmem>>, %arg1: memref<32x32xbf16, #tpu.memory_space<vmem>>, %arg2: memref<32x32xf32, #tpu.memory_space<vmem>>, %arg3: memref<1x32xf32, #tpu.memory_space<vmem>>, %arg4: memref<1x32xf32, #tpu.memory_space<vmem>>, %arg5: memref<1x32xf32, #tpu.memory_space<vmem>>, %arg6: memref<64x32xf32, #tpu.memory_space<vmem>>, %arg7: memref<1x32xf32, #tpu.memory_space<vmem>>, %arg8: memref<1x32xf32, #tpu.memory_space<vmem>>, %arg9: memref<1x32xf32, #tpu.memory_space<vmem>>, %arg10: memref<64x16xf32, #tpu.memory_space<vmem>>, %arg11: memref<1x16xf32, #tpu.memory_space<vmem>>, %arg12: memref<1x16xf32, #tpu.memory_space<vmem>>, %arg13: memref<1x16xf32, #tpu.memory_space<vmem>>, %arg14: memref<16x64xf32, #tpu.memory_space<vmem>>, %arg15: memref<3xf32, #tpu.memory_space<smem>>, %arg16: memref<32x16xf32, #tpu.memory_space<vmem>>) attributes {dimension_semantics = [], scalar_prefetch = 0 : i64, scratch_operands = 0 : i64, tpu.core_type = #tpu.core_type<tc>} {
    %c0 = arith.constant 0 : index
    %c0_0 = arith.constant 0 : index
    %0 = vector.load %arg0[%c0, %c0_0] : memref<32x16xf32, #tpu.memory_space<vmem>>, vector<32x16xf32>
    %c0_1 = arith.constant 0 : index
    %c0_2 = arith.constant 0 : index
    %1 = vector.load %arg1[%c0_1, %c0_2] : memref<32x32xbf16, #tpu.memory_space<vmem>>, vector<32x32xbf16>
    %c0_3 = arith.constant 0 : index
    %c0_4 = arith.constant 0 : index
    %2 = vector.load %arg14[%c0_3, %c0_4] : memref<16x64xf32, #tpu.memory_space<vmem>>, vector<16x64xf32>
    %cst = arith.constant dense<0.000000e+00> : vector<32x64xf32>
    %3 = tpu.matmul %0, %2, %cst {dimension_numbers = #tpu.dot_dimension_numbers<[1], [0], [0], [1], [0, 0, 1, 1], [], []>} : vector<32x16xf32>, vector<16x64xf32>, vector<32x64xf32> -> vector<32x64xf32>
    %4 = vector.extract_strided_slice %3 {offsets = [0, 0], sizes = [32, 32], strides = [1, 1]} : vector<32x64xf32> to vector<32x32xf32>
    %5 = vector.extract_strided_slice %3 {offsets = [0, 32], sizes = [32, 32], strides = [1, 1]} : vector<32x64xf32> to vector<32x32xf32>
    %6 = arith.truncf %0 : vector<32x16xf32> to vector<32x16xbf16>
    %cst_5 = arith.constant dense<0.000000e+00> : vector<32x16xf32>
    %7 = tpu.matmul %1, %6, %cst_5 {dimension_numbers = #tpu.dot_dimension_numbers<[1], [0], [0], [1], [0, 0, 1, 1], [], []>} : vector<32x32xbf16>, vector<32x16xbf16>, vector<32x16xf32> -> vector<32x16xf32>
    %8 = tpu.concatenate %0, %7 in 1 : vector<32x16xf32>, vector<32x16xf32> -> vector<32x32xf32>
    %c0_6 = arith.constant 0 : index
    %c0_7 = arith.constant 0 : index
    %9 = vector.load %arg2[%c0_6, %c0_7] : memref<32x32xf32, #tpu.memory_space<vmem>>, vector<32x32xf32>
    %cst_8 = arith.constant dense<0.000000e+00> : vector<32x32xf32>
    %10 = tpu.matmul %8, %9, %cst_8 {dimension_numbers = #tpu.dot_dimension_numbers<[1], [0], [0], [1], [0, 0, 1, 1], [], []>} : vector<32x32xf32>, vector<32x32xf32>, vector<32x32xf32> -> vector<32x32xf32>
    %c0_9 = arith.constant 0 : index
    %c0_10 = arith.constant 0 : index
    %11 = vector.load %arg3[%c0_9, %c0_10] : memref<1x32xf32, #tpu.memory_space<vmem>>, vector<1x32xf32>
    %12 = vector.broadcast %11 : vector<1x32xf32> to vector<32x32xf32>
    %13 = arith.addf %10, %12 : vector<32x32xf32>
    %c0_11 = arith.constant 0 : index
    %14 = memref.load %arg15[%c0_11] : memref<3xf32, #tpu.memory_space<smem>>
    %cst_12 = arith.constant dense<0.000000e+00> : vector<32xf32>
    %15 = vector.multi_reduction <add>, %13, %cst_12 [1] : vector<32x32xf32> to vector<32xf32>
    %16 = vector.shape_cast %15 : vector<32xf32> to vector<32x1xf32>
    %cst_13 = arith.constant 3.200000e+01 : f32
    %17 = vector.broadcast %cst_13 : f32 to vector<32x1xf32>
    %18 = arith.divf %16, %17 : vector<32x1xf32>
    %19 = vector.broadcast %18 : vector<32x1xf32> to vector<32x32xf32>
    %20 = arith.subf %13, %19 : vector<32x32xf32>
    %21 = vector.broadcast %18 : vector<32x1xf32> to vector<32x32xf32>
    %22 = arith.subf %13, %21 : vector<32x32xf32>
    %23 = arith.mulf %20, %22 : vector<32x32xf32>
    %cst_14 = arith.constant dense<0.000000e+00> : vector<32xf32>
    %24 = vector.multi_reduction <add>, %23, %cst_14 [1] : vector<32x32xf32> to vector<32xf32>
    %25 = vector.shape_cast %24 : vector<32xf32> to vector<32x1xf32>
    %cst_15 = arith.constant 3.200000e+01 : f32
    %26 = vector.broadcast %cst_15 : f32 to vector<32x1xf32>
    %27 = arith.divf %25, %26 : vector<32x1xf32>
    %28 = vector.broadcast %18 : vector<32x1xf32> to vector<32x32xf32>
    %29 = arith.subf %13, %28 : vector<32x32xf32>
    %cst_16 = arith.constant 9.99999974E-6 : f32
    %30 = vector.broadcast %cst_16 : f32 to vector<32x1xf32>
    %31 = arith.addf %27, %30 : vector<32x1xf32>
    %32 = math.rsqrt %31 : vector<32x1xf32>
    %33 = vector.broadcast %32 : vector<32x1xf32> to vector<32x32xf32>
    %34 = arith.mulf %29, %33 : vector<32x32xf32>
    %c0_17 = arith.constant 0 : index
    %c0_18 = arith.constant 0 : index
    %35 = vector.load %arg4[%c0_17, %c0_18] : memref<1x32xf32, #tpu.memory_space<vmem>>, vector<1x32xf32>
    %36 = vector.broadcast %35 : vector<1x32xf32> to vector<32x32xf32>
    %37 = arith.mulf %34, %36 : vector<32x32xf32>
    %c0_19 = arith.constant 0 : index
    %c0_20 = arith.constant 0 : index
    %38 = vector.load %arg5[%c0_19, %c0_20] : memref<1x32xf32, #tpu.memory_space<vmem>>, vector<1x32xf32>
    %39 = vector.broadcast %38 : vector<1x32xf32> to vector<32x32xf32>
    %40 = arith.addf %37, %39 : vector<32x32xf32>
    %cst_21 = arith.constant 0.000000e+00 : f32
    %41 = vector.broadcast %cst_21 : f32 to vector<32x32xf32>
    %42 = arith.cmpf oge, %40, %41 : vector<32x32xf32>
    %43 = vector.broadcast %14 : f32 to vector<32x32xf32>
    %44 = arith.mulf %43, %40 : vector<32x32xf32>
    %45 = arith.select %42, %40, %44 : vector<32x32xi1>, vector<32x32xf32>
    %46 = arith.addf %45, %4 : vector<32x32xf32>
    %47 = arith.truncf %46 : vector<32x32xf32> to vector<32x32xbf16>
    %cst_22 = arith.constant dense<0.000000e+00> : vector<32x32xf32>
    %48 = tpu.matmul %1, %47, %cst_22 {dimension_numbers = #tpu.dot_dimension_numbers<[1], [0], [0], [1], [0, 0, 1, 1], [], []>} : vector<32x32xbf16>, vector<32x32xbf16>, vector<32x32xf32> -> vector<32x32xf32>
    %49 = tpu.concatenate %46, %48 in 1 : vector<32x32xf32>, vector<32x32xf32> -> vector<32x64xf32>
    %c0_23 = arith.constant 0 : index
    %c0_24 = arith.constant 0 : index
    %50 = vector.load %arg6[%c0_23, %c0_24] : memref<64x32xf32, #tpu.memory_space<vmem>>, vector<64x32xf32>
    %cst_25 = arith.constant dense<0.000000e+00> : vector<32x32xf32>
    %51 = tpu.matmul %49, %50, %cst_25 {dimension_numbers = #tpu.dot_dimension_numbers<[1], [0], [0], [1], [0, 0, 1, 1], [], []>} : vector<32x64xf32>, vector<64x32xf32>, vector<32x32xf32> -> vector<32x32xf32>
    %c0_26 = arith.constant 0 : index
    %c0_27 = arith.constant 0 : index
    %52 = vector.load %arg7[%c0_26, %c0_27] : memref<1x32xf32, #tpu.memory_space<vmem>>, vector<1x32xf32>
    %53 = vector.broadcast %52 : vector<1x32xf32> to vector<32x32xf32>
    %54 = arith.addf %51, %53 : vector<32x32xf32>
    %c1 = arith.constant 1 : index
    %55 = memref.load %arg15[%c1] : memref<3xf32, #tpu.memory_space<smem>>
    %cst_28 = arith.constant dense<0.000000e+00> : vector<32xf32>
    %56 = vector.multi_reduction <add>, %54, %cst_28 [1] : vector<32x32xf32> to vector<32xf32>
    %57 = vector.shape_cast %56 : vector<32xf32> to vector<32x1xf32>
    %cst_29 = arith.constant 3.200000e+01 : f32
    %58 = vector.broadcast %cst_29 : f32 to vector<32x1xf32>
    %59 = arith.divf %57, %58 : vector<32x1xf32>
    %60 = vector.broadcast %59 : vector<32x1xf32> to vector<32x32xf32>
    %61 = arith.subf %54, %60 : vector<32x32xf32>
    %62 = vector.broadcast %59 : vector<32x1xf32> to vector<32x32xf32>
    %63 = arith.subf %54, %62 : vector<32x32xf32>
    %64 = arith.mulf %61, %63 : vector<32x32xf32>
    %cst_30 = arith.constant dense<0.000000e+00> : vector<32xf32>
    %65 = vector.multi_reduction <add>, %64, %cst_30 [1] : vector<32x32xf32> to vector<32xf32>
    %66 = vector.shape_cast %65 : vector<32xf32> to vector<32x1xf32>
    %cst_31 = arith.constant 3.200000e+01 : f32
    %67 = vector.broadcast %cst_31 : f32 to vector<32x1xf32>
    %68 = arith.divf %66, %67 : vector<32x1xf32>
    %69 = vector.broadcast %59 : vector<32x1xf32> to vector<32x32xf32>
    %70 = arith.subf %54, %69 : vector<32x32xf32>
    %cst_32 = arith.constant 9.99999974E-6 : f32
    %71 = vector.broadcast %cst_32 : f32 to vector<32x1xf32>
    %72 = arith.addf %68, %71 : vector<32x1xf32>
    %73 = math.rsqrt %72 : vector<32x1xf32>
    %74 = vector.broadcast %73 : vector<32x1xf32> to vector<32x32xf32>
    %75 = arith.mulf %70, %74 : vector<32x32xf32>
    %c0_33 = arith.constant 0 : index
    %c0_34 = arith.constant 0 : index
    %76 = vector.load %arg8[%c0_33, %c0_34] : memref<1x32xf32, #tpu.memory_space<vmem>>, vector<1x32xf32>
    %77 = vector.broadcast %76 : vector<1x32xf32> to vector<32x32xf32>
    %78 = arith.mulf %75, %77 : vector<32x32xf32>
    %c0_35 = arith.constant 0 : index
    %c0_36 = arith.constant 0 : index
    %79 = vector.load %arg9[%c0_35, %c0_36] : memref<1x32xf32, #tpu.memory_space<vmem>>, vector<1x32xf32>
    %80 = vector.broadcast %79 : vector<1x32xf32> to vector<32x32xf32>
    %81 = arith.addf %78, %80 : vector<32x32xf32>
    %cst_37 = arith.constant 0.000000e+00 : f32
    %82 = vector.broadcast %cst_37 : f32 to vector<32x32xf32>
    %83 = arith.cmpf oge, %81, %82 : vector<32x32xf32>
    %84 = vector.broadcast %55 : f32 to vector<32x32xf32>
    %85 = arith.mulf %84, %81 : vector<32x32xf32>
    %86 = arith.select %83, %81, %85 : vector<32x32xi1>, vector<32x32xf32>
    %87 = arith.addf %45, %86 : vector<32x32xf32>
    %88 = arith.addf %87, %5 : vector<32x32xf32>
    %89 = arith.truncf %88 : vector<32x32xf32> to vector<32x32xbf16>
    %cst_38 = arith.constant dense<0.000000e+00> : vector<32x32xf32>
    %90 = tpu.matmul %1, %89, %cst_38 {dimension_numbers = #tpu.dot_dimension_numbers<[1], [0], [0], [1], [0, 0, 1, 1], [], []>} : vector<32x32xbf16>, vector<32x32xbf16>, vector<32x32xf32> -> vector<32x32xf32>
    %91 = tpu.concatenate %88, %90 in 1 : vector<32x32xf32>, vector<32x32xf32> -> vector<32x64xf32>
    %c0_39 = arith.constant 0 : index
    %c0_40 = arith.constant 0 : index
    %92 = vector.load %arg10[%c0_39, %c0_40] : memref<64x16xf32, #tpu.memory_space<vmem>>, vector<64x16xf32>
    %cst_41 = arith.constant dense<0.000000e+00> : vector<32x16xf32>
    %93 = tpu.matmul %91, %92, %cst_41 {dimension_numbers = #tpu.dot_dimension_numbers<[1], [0], [0], [1], [0, 0, 1, 1], [], []>} : vector<32x64xf32>, vector<64x16xf32>, vector<32x16xf32> -> vector<32x16xf32>
    %c0_42 = arith.constant 0 : index
    %c0_43 = arith.constant 0 : index
    %94 = vector.load %arg11[%c0_42, %c0_43] : memref<1x16xf32, #tpu.memory_space<vmem>>, vector<1x16xf32>
    %95 = vector.broadcast %94 : vector<1x16xf32> to vector<32x16xf32>
    %96 = arith.addf %93, %95 : vector<32x16xf32>
    %c2 = arith.constant 2 : index
    %97 = memref.load %arg15[%c2] : memref<3xf32, #tpu.memory_space<smem>>
    %cst_44 = arith.constant dense<0.000000e+00> : vector<32xf32>
    %98 = vector.multi_reduction <add>, %96, %cst_44 [1] : vector<32x16xf32> to vector<32xf32>
    %99 = vector.shape_cast %98 : vector<32xf32> to vector<32x1xf32>
    %cst_45 = arith.constant 1.600000e+01 : f32
    %100 = vector.broadcast %cst_45 : f32 to vector<32x1xf32>
    %101 = arith.divf %99, %100 : vector<32x1xf32>
    %102 = vector.broadcast %101 : vector<32x1xf32> to vector<32x16xf32>
    %103 = arith.subf %96, %102 : vector<32x16xf32>
    %104 = vector.broadcast %101 : vector<32x1xf32> to vector<32x16xf32>
    %105 = arith.subf %96, %104 : vector<32x16xf32>
    %106 = arith.mulf %103, %105 : vector<32x16xf32>
    %cst_46 = arith.constant dense<0.000000e+00> : vector<32xf32>
    %107 = vector.multi_reduction <add>, %106, %cst_46 [1] : vector<32x16xf32> to vector<32xf32>
    %108 = vector.shape_cast %107 : vector<32xf32> to vector<32x1xf32>
    %cst_47 = arith.constant 1.600000e+01 : f32
    %109 = vector.broadcast %cst_47 : f32 to vector<32x1xf32>
    %110 = arith.divf %108, %109 : vector<32x1xf32>
    %111 = vector.broadcast %101 : vector<32x1xf32> to vector<32x16xf32>
    %112 = arith.subf %96, %111 : vector<32x16xf32>
    %cst_48 = arith.constant 9.99999974E-6 : f32
    %113 = vector.broadcast %cst_48 : f32 to vector<32x1xf32>
    %114 = arith.addf %110, %113 : vector<32x1xf32>
    %115 = math.rsqrt %114 : vector<32x1xf32>
    %116 = vector.broadcast %115 : vector<32x1xf32> to vector<32x16xf32>
    %117 = arith.mulf %112, %116 : vector<32x16xf32>
    %c0_49 = arith.constant 0 : index
    %c0_50 = arith.constant 0 : index
    %118 = vector.load %arg12[%c0_49, %c0_50] : memref<1x16xf32, #tpu.memory_space<vmem>>, vector<1x16xf32>
    %119 = vector.broadcast %118 : vector<1x16xf32> to vector<32x16xf32>
    %120 = arith.mulf %117, %119 : vector<32x16xf32>
    %c0_51 = arith.constant 0 : index
    %c0_52 = arith.constant 0 : index
    %121 = vector.load %arg13[%c0_51, %c0_52] : memref<1x16xf32, #tpu.memory_space<vmem>>, vector<1x16xf32>
    %122 = vector.broadcast %121 : vector<1x16xf32> to vector<32x16xf32>
    %123 = arith.addf %120, %122 : vector<32x16xf32>
    %cst_53 = arith.constant 0.000000e+00 : f32
    %124 = vector.broadcast %cst_53 : f32 to vector<32x16xf32>
    %125 = arith.cmpf oge, %123, %124 : vector<32x16xf32>
    %126 = vector.broadcast %97 : f32 to vector<32x16xf32>
    %127 = arith.mulf %126, %123 : vector<32x16xf32>
    %128 = arith.select %125, %123, %127 : vector<32x16xi1>, vector<32x16xf32>
    %c0_54 = arith.constant 0 : index
    %c0_55 = arith.constant 0 : index
    %129 = vector.load %arg16[%c0_54, %c0_55] : memref<32x16xf32, #tpu.memory_space<vmem>>, vector<32x16xf32>
    tpu.vector_store %arg16[%c0_54, %c0_55], %128 {strides = array<i32>} : memref<32x16xf32, #tpu.memory_space<vmem>>, vector<32x16xf32>,
    return
  }
}

</mosaic_0001>

<llo_original>
// kernel: graphsage_gcn_forward.1
$region0: #{graphsage_gcn_forward.1}
  #allocation0 [shape = 'u32[]', space=smem, size = 0x4, offset = 0x4, fixed_abs, tag = 'smem constant byte address 0x4 - core index']
  #allocation1 [shape = 'u32[144,128]{1,0:T(1,128)}', space=vmem, size = 0x12000, scoped, tag = 'internal scratch']
  %s0 = inlined_call_operand.vmem [shape: f32[32,16], index: 0, kind: input, shape index: {}]
  %s1 = inlined_call_operand.vmem [shape: bf16[32,32], index: 1, kind: input, shape index: {}]
  %s2 = inlined_call_operand.vmem [shape: f32[32,32], index: 2, kind: input, shape index: {}]
  %s3 = inlined_call_operand.vmem [shape: f32[1,32], index: 3, kind: input, shape index: {}]
  %s4 = inlined_call_operand.vmem [shape: f32[1,32], index: 4, kind: input, shape index: {}]
  %s5 = inlined_call_operand.vmem [shape: f32[1,32], index: 5, kind: input, shape index: {}]
  %s6 = inlined_call_operand.vmem [shape: f32[64,32], index: 6, kind: input, shape index: {}]
  %s7 = inlined_call_operand.vmem [shape: f32[1,32], index: 7, kind: input, shape index: {}]
  %s8 = inlined_call_operand.vmem [shape: f32[1,32], index: 8, kind: input, shape index: {}]
  %s9 = inlined_call_operand.vmem [shape: f32[1,32], index: 9, kind: input, shape index: {}]
  %s10 = inlined_call_operand.vmem [shape: f32[64,16], index: 10, kind: input, shape index: {}]
  %s11 = inlined_call_operand.vmem [shape: f32[1,16], index: 11, kind: input, shape index: {}]
  %s12 = inlined_call_operand.vmem [shape: f32[1,16], index: 12, kind: input, shape index: {}]
  %s13 = inlined_call_operand.vmem [shape: f32[1,16], index: 13, kind: input, shape index: {}]
  %s14 = inlined_call_operand.vmem [shape: f32[16,64], index: 14, kind: input, shape index: {}]
  %s15 = inlined_call_operand.vmem [shape: f32[3], index: 15, kind: input, shape index: {}]
  %s16 = inlined_call_operand.vmem [shape: f32[32,16], index: 16, kind: output, shape index: {}]
  %s17 = sld [smem:[#allocation0]]
  $region78: #{graphsage_gcn_forward.1} parent=0
    _
  %s19 = ssub.s32 1, %s17
  %s20 = scalar_select 0, %s19, %s17
  $region1: #{graphsage_gcn_forward.1} parent=0
    #allocation2 [shape = 'u8[512]{0}', space=smem, size = 0x200, scoped, tag = 'input window, operand 15, single buffered']
    #allocation3 [shape = 's32[1]{0}', space=sflag, size = 0x4, scoped, tag = 'scoped memory for graphsage_gcn_forward.1']
    %21 = vsyncpa [#allocation3], 0
    // Predicated region
    $region2: #{graphsage_gcn_forward.1} parent=1 // pred_check
      _
    $region3: #{graphsage_gcn_forward.1} parent=1 // pred_check_branch
      %23 = sbr.rel (0) target = $region5
    $region4: #{graphsage_gcn_forward.1} parent=1 // pred_region
      _
    $region5: #{graphsage_gcn_forward.1} parent=1 // pred_fallthru
      _
    // Predicated region
    $region6: #{graphsage_gcn_forward.1} parent=1 // pred_check
      _
    $region7: #{graphsage_gcn_forward.1} parent=1 // pred_check_branch
      %25 = sbr.rel (0) target = $region9
    $region8: #{graphsage_gcn_forward.1} parent=1 // pred_region
      _
    $region9: #{graphsage_gcn_forward.1} parent=1 // pred_fallthru
      _
    // Predicated region
    $region10: #{graphsage_gcn_forward.1} parent=1 // pred_check
      _
    $region11: #{graphsage_gcn_forward.1} parent=1 // pred_check_branch
      %27 = sbr.rel (0) target = $region13
    $region12: #{graphsage_gcn_forward.1} parent=1 // pred_region
      _
    $region13: #{graphsage_gcn_forward.1} parent=1 // pred_fallthru
      _
    // Predicated region
    $region14: #{graphsage_gcn_forward.1} parent=1 // pred_check
      _
    $region15: #{graphsage_gcn_forward.1} parent=1 // pred_check_branch
      %29 = sbr.rel (0) target = $region17
    $region16: #{graphsage_gcn_forward.1} parent=1 // pred_region
      _
    $region17: #{graphsage_gcn_forward.1} parent=1 // pred_fallthru
      _
    // Predicated region
    $region18: #{graphsage_gcn_forward.1} parent=1 // pred_check
      _
    $region19: #{graphsage_gcn_forward.1} parent=1 // pred_check_branch
      %31 = sbr.rel (0) target = $region21
    $region20: #{graphsage_gcn_forward.1} parent=1 // pred_region
      _
    $region21: #{graphsage_gcn_forward.1} parent=1 // pred_fallthru
      _
    // Predicated region
    $region22: #{graphsage_gcn_forward.1} parent=1 // pred_check
      _
    $region23: #{graphsage_gcn_forward.1} parent=1 // pred_check_branch
      %33 = sbr.rel (0) target = $region25
    $region24: #{graphsage_gcn_forward.1} parent=1 // pred_region
      _
    $region25: #{graphsage_gcn_forward.1} parent=1 // pred_fallthru
      _
    // Predicated region
    $region26: #{graphsage_gcn_forward.1} parent=1 // pred_check
      _
    $region27: #{graphsage_gcn_forward.1} parent=1 // pred_check_branch
      %35 = sbr.rel (0) target = $region29
    $region28: #{graphsage_gcn_forward.1} parent=1 // pred_region
      _
    $region29: #{graphsage_gcn_forward.1} parent=1 // pred_fallthru
      _
    // Predicated region
    $region30: #{graphsage_gcn_forward.1} parent=1 // pred_check
      _
    $region31: #{graphsage_gcn_forward.1} parent=1 // pred_check_branch
      %37 = sbr.rel (0) target = $region33
    $region32: #{graphsage_gcn_forward.1} parent=1 // pred_region
      _
    $region33: #{graphsage_gcn_forward.1} parent=1 // pred_fallthru
      _
    // Predicated region
    $region34: #{graphsage_gcn_forward.1} parent=1 // pred_check
      _
    $region35: #{graphsage_gcn_forward.1} parent=1 // pred_check_branch
      %39 = sbr.rel (0) target = $region37
    $region36: #{graphsage_gcn_forward.1} parent=1 // pred_region
      _
    $region37: #{graphsage_gcn_forward.1} parent=1 // pred_fallthru
      _
    // Predicated region
    $region38: #{graphsage_gcn_forward.1} parent=1 // pred_check
      _
    $region39: #{graphsage_gcn_forward.1} parent=1 // pred_check_branch
      %41 = sbr.rel (0) target = $region41
    $region40: #{graphsage_gcn_forward.1} parent=1 // pred_region
      _
    $region41: #{graphsage_gcn_forward.1} parent=1 // pred_fallthru
      _
    // Predicated region
    $region42: #{graphsage_gcn_forward.1} parent=1 // pred_check
      _
    $region43: #{graphsage_gcn_forward.1} parent=1 // pred_check_branch
      %43 = sbr.rel (0) target = $region45
    $region44: #{graphsage_gcn_forward.1} parent=1 // pred_region
      _
    $region45: #{graphsage_gcn_forward.1} parent=1 // pred_fallthru
      _
    // Predicated region
    $region46: #{graphsage_gcn_forward.1} parent=1 // pred_check
      _
    $region47: #{graphsage_gcn_forward.1} parent=1 // pred_check_branch
      %45 = sbr.rel (0) target = $region49
    $region48: #{graphsage_gcn_forward.1} parent=1 // pred_region
      _
    $region49: #{graphsage_gcn_forward.1} parent=1 // pred_fallthru
      _
    // Predicated region
    $region50: #{graphsage_gcn_forward.1} parent=1 // pred_check
      _
    $region51: #{graphsage_gcn_forward.1} parent=1 // pred_check_branch
      %47 = sbr.rel (0) target = $region53
    $region52: #{graphsage_gcn_forward.1} parent=1 // pred_region
      _
    $region53: #{graphsage_gcn_forward.1} parent=1 // pred_fallthru
      _
    // Predicated region
    $region54: #{graphsage_gcn_forward.1} parent=1 // pred_check
      _
    $region55: #{graphsage_gcn_forward.1} parent=1 // pred_check_branch
      %49 = sbr.rel (0) target = $region57
    $region56: #{graphsage_gcn_forward.1} parent=1 // pred_region
      _
    $region57: #{graphsage_gcn_forward.1} parent=1 // pred_fallthru
      _
    // Predicated region
    $region58: #{graphsage_gcn_forward.1} parent=1 // pred_check
      _
    $region59: #{graphsage_gcn_forward.1} parent=1 // pred_check_branch
      %51 = sbr.rel (0) target = $region61
    $region60: #{graphsage_gcn_forward.1} parent=1 // pred_region
      _
    $region61: #{graphsage_gcn_forward.1} parent=1 // pred_fallthru
      _
    // Predicated region
    $region62: #{graphsage_gcn_forward.1} parent=1 // pred_check
      _
    $region63: #{graphsage_gcn_forward.1} parent=1 // pred_check_branch
      %53 = sbr.rel (0) target = $region65
    $region64: #{graphsage_gcn_forward.1} parent=1 // pred_region
      %s55 = ssub.s32 16, 16
      %56 = vsyncadd [#allocation3], %s55
      %s58 = sshll.u32 %s15, 4
      %s59 = int_to_ptr.vmem [resolvable:$true] %s58
      %61 = dma.vmem_to_smem %s59, 16, [#allocation2], [#allocation3]
    $region65: #{graphsage_gcn_forward.1} parent=1 // pred_fallthru
      _
    // Predicated region
    $region66: #{graphsage_gcn_forward.1} parent=1 // pred_check
      _
    $region67: #{graphsage_gcn_forward.1} parent=1 // pred_check_branch
      %63 = sbr.rel (0) target = $region69
    $region68: #{graphsage_gcn_forward.1} parent=1 // pred_region
      %64 = dma.done [#allocation3], 16
    $region69: #{graphsage_gcn_forward.1} parent=1 // pred_fallthru
      _
    %65 = sfence
    %v67 = vld [vmem:[%s0] sm:$0xff]
    %v68 = vld [vmem:[%s0 + $0x8] sm:$0xff]
    %v69 = vld [vmem:[%s0 + $0x10] sm:$0xff]
    %v70 = vld [vmem:[%s0 + $0x18] sm:$0xff]
    %v71 = vld [vmem:[%s1] sm:$0xf]
    %v72 = vld [vmem:[%s1 + $0x4] sm:$0xf]
    %v73 = vld [vmem:[%s1 + $0x8] sm:$0xf]
    %v74 = vld [vmem:[%s1 + $0xc] sm:$0xf]
    %v75 = vld [vmem:[%s14] sm:$0xff]
    %v76 = vld [vmem:[%s14 + $0x8] sm:$0xff]
    %vm77 = vcmask 130048
    %v79 = vsel %vm77, %v67, 0
    %v82 = vsel %vm77, %v68, 0
    %v85 = vsel %vm77, %v69, 0
    %v88 = vsel %vm77, %v70, 0
    %90 = vmatprep.subr.mxu0 0.0
    %91 = vmatpush1.msra.mxu0 %v75
    %92 = vmatprep.subr.mxu0 0.0
    %93 = vmatpush1.msra.mxu0 %v76
    %94 = vmatprep.subr.mxu0 0.0
    %95 = vmatpush1.msra.mxu0 0.0
    %96 = vmatprep.subr.mxu0 0.0
    %97 = vmatpush1.msra.mxu0 0.0
    %98 = vmatprep.subr.mxu0 0.0
    %99 = vmatpush1.msra.mxu0 0.0
    %100 = vmatprep.subr.mxu0 0.0
    %101 = vmatpush1.msra.mxu0 0.0
    %102 = vmatprep.subr.mxu0 0.0
    %103 = vmatpush1.msra.mxu0 0.0
    %104 = vmatprep.subr.mxu0 0.0
    %105 = vmatpush1.msra.mxu0 0.0
    %106 = vmatprep.subr.mxu0 0.0
    %107 = vmatpush1.msra.mxu0 0.0
    %108 = vmatprep.subr.mxu0 0.0
    %109 = vmatpush1.msra.mxu0 0.0
    %110 = vmatprep.subr.mxu0 0.0
    %111 = vmatpush1.msra.mxu0 0.0
    %112 = vmatprep.subr.mxu0 0.0
    %113 = vmatpush1.msra.mxu0 0.0
    %114 = vmatprep.subr.mxu0 0.0
    %115 = vmatpush1.msra.mxu0 0.0
    %116 = vmatprep.subr.mxu0 0.0
    %117 = vmatpush1.msra.mxu0 0.0
    %118 = vmatprep.subr.mxu0 0.0
    %119 = vmatpush1.msra.mxu0 0.0
    %120 = vmatprep.subr.mxu0 0.0
    %121 = vmatpush1.msra.mxu0 0.0
    %122 = vmatprep.subr.mxu0 0.0
    %123 = vmatpush1.msra.mxu0 0.0
    %124 = vmatprep.subr.mxu0 0.0
    %125 = vmatpush1.msra.mxu0 0.0
    %126 = vmatprep.subr.mxu0 0.0
    %127 = vmatpush1.msra.mxu0 0.0
    %128 = vmatprep.subr.mxu0 0.0
    %129 = vmatpush1.msra.mxu0 0.0
    %130 = vmatprep.subr.mxu0 0.0
    %131 = vmatpush1.msra.mxu0 0.0
    %132 = vmatprep.subr.mxu0 0.0
    %133 = vmatpush1.msra.mxu0 0.0
    %134 = vmatprep.subr.mxu0 0.0
    %135 = vmatpush1.msra.mxu0 0.0
    %136 = vmatprep.subr.mxu0 0.0
    %137 = vmatpush1.msra.mxu0 0.0
    %138 = vmatprep.subr.mxu0 0.0
    %139 = vmatpush1.msra.mxu0 0.0
    %140 = vmatprep.subr.mxu0 0.0
    %141 = vmatpush1.msra.mxu0 0.0
    %142 = vmatprep.subr.mxu0 0.0
    %143 = vmatpush1.msra.mxu0 0.0
    %144 = vmatprep.subr.mxu0 0.0
    %145 = vmatpush1.msra.mxu0 0.0
    %146 = vmatprep.subr.mxu0 0.0
    %147 = vmatpush1.msra.mxu0 0.0
    %148 = vmatprep.subr.mxu0 0.0
    %149 = vmatpush1.msra.mxu0 0.0
    %150 = vmatprep.subr.mxu0 0.0
    %151 = vmatpush1.msra.mxu0 0.0
    %152 = vmatprep.subr.mxu0 0.0
    %153 = vmatpush1.msra.mxu0 0.0
    %154 = vmatprep.mubr.f32.mxu0 0.0
    %155 = vmatmul.mubr.f32.gmra.mrb[0].mxu0 %v79
    %v156 = vpop.f32.mrb[0].mxu0
    %v157 = vadd.f32 0.0, %v156
    %v158 = vpop.f32.mrb[0].mxu0
    %159 = vmatprep.mubr.f32.mxu0 0.0
    %160 = vmatmul.mubr.f32.gmra.mrb[0].mxu0 %v82
    %v161 = vpop.f32.mrb[0].mxu0
    %v162 = vadd.f32 0.0, %v161
    %v163 = vpop.f32.mrb[0].mxu0
    %164 = vmatprep.mubr.f32.mxu0 0.0
    %165 = vmatmul.mubr.f32.gmra.mrb[0].mxu0 %v85
    %v166 = vpop.f32.mrb[0].mxu0
    %v167 = vadd.f32 0.0, %v166
    %v168 = vpop.f32.mrb[0].mxu0
    %169 = vmatprep.mubr.f32.mxu0 0.0
    %170 = vmatmul.mubr.f32.gmra.mrb[0].mxu0 %v88
    %v171 = vpop.f32.mrb[0].mxu0
    %v172 = vadd.f32 0.0, %v171
    %v173 = vpop.f32.mrb[0].mxu0
    %174 = vdwg.mxu0
    %v175 = vpack.c.bf16 %v68, %v67
    %v176 = vpack.c.bf16 %v70, %v69
    %v181 = vunpack.c.l.b16 %v71
    %v182 = vunpack.c.l.b16 %v72
    %v183 = vunpack.c.l.b16 %v73
    %v184 = vunpack.c.l.b16 %v74
    %v185 = vpack.c.b16 %v182, %v181
    %v186 = vpack.c.b16 %v184, %v183
    %vm187 = vcmask 261120
    %v189 = vsel %vm187, %v185, 0
    %v192 = vsel %vm187, %v186, 0
    %194 = vmatprep.subr.bf16.mxu0 0
    %195 = vmatpush1.bf16.msra.mxu0 %v175
    %196 = vmatprep.subr.bf16.mxu0 0
    %197 = vmatpush1.bf16.msra.mxu0 %v176
    %198 = vmatprep.subr.bf16.mxu0 0
    %199 = vmatpush1.bf16.msra.mxu0 0
    %200 = vmatprep.subr.bf16.mxu0 0
    %201 = vmatpush1.bf16.msra.mxu0 0
    %202 = vmatprep.subr.bf16.mxu0 0
    %203 = vmatpush1.bf16.msra.mxu0 0
    %204 = vmatprep.subr.bf16.mxu0 0
    %205 = vmatpush1.bf16.msra.mxu0 0
    %206 = vmatprep.subr.bf16.mxu0 0
    %207 = vmatpush1.bf16.msra.mxu0 0
    %208 = vmatprep.subr.bf16.mxu0 0
    %209 = vmatpush1.bf16.msra.mxu0 0
    %210 = vmatprep.subr.bf16.mxu0 0
    %211 = vmatpush1.bf16.msra.mxu0 0
    %212 = vmatprep.subr.bf16.mxu0 0
    %213 = vmatpush1.bf16.msra.mxu0 0
    %214 = vmatprep.subr.bf16.mxu0 0
    %215 = vmatpush1.bf16.msra.mxu0 0
    %216 = vmatprep.subr.bf16.mxu0 0
    %217 = vmatpush1.bf16.msra.mxu0 0
    %218 = vmatprep.subr.bf16.mxu0 0
    %219 = vmatpush1.bf16.msra.mxu0 0
    %220 = vmatprep.subr.bf16.mxu0 0
    %221 = vmatpush1.bf16.msra.mxu0 0
    %222 = vmatprep.subr.bf16.mxu0 0
    %223 = vmatpush1.bf16.msra.mxu0 0
    %224 = vmatprep.subr.bf16.mxu0 0
    %225 = vmatpush1.bf16.msra.mxu0 0
    %226 = vmatprep.mubr.bf16.mxu0 0
    %227 = vmatmul.mubr.bf16.gmra.mrb[0].mxu0 %v189
    %v228 = vpop.f32.mrb[0].mxu0
    %v229 = vadd.f32 0.0, %v228
    %v230 = vpop.f32.mrb[0].mxu0
    %v231 = vpop.f32.mrb[0].mxu0
    %v232 = vadd.f32 0.0, %v231
    %v233 = vpop.f32.mrb[0].mxu0
    %234 = vmatprep.mubr.bf16.mxu0 0
    %235 = vmatmul.mubr.bf16.gmra.mrb[0].mxu0 %v192
    %v236 = vpop.f32.mrb[0].mxu0
    %v237 = vadd.f32 0.0, %v236
    %v238 = vpop.f32.mrb[0].mxu0
    %v239 = vpop.f32.mrb[0].mxu0
    %v240 = vadd.f32 0.0, %v239
    %v241 = vpop.f32.mrb[0].mxu0
    %242 = vdwg.mxu0
    %247 = vrot.lane.b32.xlu0 %v229, 16
    %v248 = vpop.permute.xlu0 %247
    %249 = vrot.lane.b32.xlu0 %v232, 16
    %v250 = vpop.permute.xlu0 %249
    %251 = vrot.lane.b32.xlu0 %v237, 16
    %v252 = vpop.permute.xlu0 %251
    %253 = vrot.lane.b32.xlu0 %v240, 16
    %v254 = vpop.permute.xlu0 %253
    %v259 = vsel %vm77, %v67, %v248
    %v260 = vsel %vm77, %v68, %v250
    %v261 = vsel %vm77, %v69, %v252
    %v262 = vsel %vm77, %v70, %v254
    %v263 = vld [vmem:[%s2] sm:$0xff]
    %v264 = vld [vmem:[%s2 + $0x8] sm:$0xff]
    %v265 = vld [vmem:[%s2 + $0x10] sm:$0xff]
    %v266 = vld [vmem:[%s2 + $0x18] sm:$0xff]
    %v267 = vld [vmem:[%s3] sm:$0x1]
    %v269 = vlaneseq
    %v270 = vshrl.u32 %v269, 7
    %v271 = vsub.s32 0, %v270
    %v272 = vrot.slane %v267, %v271
    %v275 = vsel %vm187, %v259, 0
    %v278 = vsel %vm187, %v260, 0
    %v281 = vsel %vm187, %v261, 0
    %v284 = vsel %vm187, %v262, 0
    %286 = vmatprep.subr.mxu0 0.0
    %287 = vmatpush1.msra.mxu0 %v263
    %288 = vmatprep.subr.mxu0 0.0
    %289 = vmatpush1.msra.mxu0 %v264
    %290 = vmatprep.subr.mxu0 0.0
    %291 = vmatpush1.msra.mxu0 %v265
    %292 = vmatprep.subr.mxu0 0.0
    %293 = vmatpush1.msra.mxu0 %v266
    %294 = vmatprep.subr.mxu0 0.0
    %295 = vmatpush1.msra.mxu0 0.0
    %296 = vmatprep.subr.mxu0 0.0
    %297 = vmatpush1.msra.mxu0 0.0
    %298 = vmatprep.subr.mxu0 0.0
    %299 = vmatpush1.msra.mxu0 0.0
    %300 = vmatprep.subr.mxu0 0.0
    %301 = vmatpush1.msra.mxu0 0.0
    %302 = vmatprep.subr.mxu0 0.0
    %303 = vmatpush1.msra.mxu0 0.0
    %304 = vmatprep.subr.mxu0 0.0
    %305 = vmatpush1.msra.mxu0 0.0
    %306 = vmatprep.subr.mxu0 0.0
    %307 = vmatpush1.msra.mxu0 0.0
    %308 = vmatprep.subr.mxu0 0.0
    %309 = vmatpush1.msra.mxu0 0.0
    %310 = vmatprep.subr.mxu0 0.0
    %311 = vmatpush1.msra.mxu0 0.0
    %312 = vmatprep.subr.mxu0 0.0
    %313 = vmatpush1.msra.mxu0 0.0
    %314 = vmatprep.subr.mxu0 0.0
    %315 = vmatpush1.msra.mxu0 0.0
    %316 = vmatprep.subr.mxu0 0.0
    %317 = vmatpush1.msra.mxu0 0.0
    %318 = vmatprep.subr.mxu0 0.0
    %319 = vmatpush1.msra.mxu0 0.0
    %320 = vmatprep.subr.mxu0 0.0
    %321 = vmatpush1.msra.mxu0 0.0
    %322 = vmatprep.subr.mxu0 0.0
    %323 = vmatpush1.msra.mxu0 0.0
    %324 = vmatprep.subr.mxu0 0.0
    %325 = vmatpush1.msra.mxu0 0.0
    %326 = vmatprep.subr.mxu0 0.0
    %327 = vmatpush1.msra.mxu0 0.0
    %328 = vmatprep.subr.mxu0 0.0
    %329 = vmatpush1.msra.mxu0 0.0
    %330 = vmatprep.subr.mxu0 0.0
    %331 = vmatpush1.msra.mxu0 0.0
    %332 = vmatprep.subr.mxu0 0.0
    %333 = vmatpush1.msra.mxu0 0.0
    %334 = vmatprep.subr.mxu0 0.0
    %335 = vmatpush1.msra.mxu0 0.0
    %336 = vmatprep.subr.mxu0 0.0
    %337 = vmatpush1.msra.mxu0 0.0
    %338 = vmatprep.subr.mxu0 0.0
    %339 = vmatpush1.msra.mxu0 0.0
    %340 = vmatprep.subr.mxu0 0.0
    %341 = vmatpush1.msra.mxu0 0.0
    %342 = vmatprep.subr.mxu0 0.0
    %343 = vmatpush1.msra.mxu0 0.0
    %344 = vmatprep.subr.mxu0 0.0
    %345 = vmatpush1.msra.mxu0 0.0
    %346 = vmatprep.subr.mxu0 0.0
    %347 = vmatpush1.msra.mxu0 0.0
    %348 = vmatprep.subr.mxu0 0.0
    %349 = vmatpush1.msra.mxu0 0.0
    %350 = vmatprep.mubr.f32.mxu0 0.0
    %351 = vmatmul.mubr.f32.gmra.mrb[0].mxu0 %v275
    %v352 = vpop.f32.mrb[0].mxu0
    %v353 = vadd.f32 %v272, %v352
    %v354 = vpop.f32.mrb[0].mxu0
    %355 = vmatprep.mubr.f32.mxu0 0.0
    %356 = vmatmul.mubr.f32.gmra.mrb[0].mxu0 %v278
    %v357 = vpop.f32.mrb[0].mxu0
    %v358 = vadd.f32 %v272, %v357
    %v359 = vpop.f32.mrb[0].mxu0
    %360 = vmatprep.mubr.f32.mxu0 0.0
    %361 = vmatmul.mubr.f32.gmra.mrb[0].mxu0 %v281
    %v362 = vpop.f32.mrb[0].mxu0
    %v363 = vadd.f32 %v272, %v362
    %v364 = vpop.f32.mrb[0].mxu0
    %365 = vmatprep.mubr.f32.mxu0 0.0
    %366 = vmatmul.mubr.f32.gmra.mrb[0].mxu0 %v284
    %v367 = vpop.f32.mrb[0].mxu0
    %v368 = vadd.f32 %v272, %v367
    %v369 = vpop.f32.mrb[0].mxu0
    %370 = vdwg.mxu0
    %s371 = sld [smem:[#allocation2]]
    %v372 = vsel %vm187, %v353, 0.0
    %373 = vadd.xlane.f32.xlu0 %v372
    %v374 = vpop.xlane.xlu0 %373
    %v375 = vsel %vm187, %v358, 0.0
    %376 = vadd.xlane.f32.xlu0 %v375
    %v377 = vpop.xlane.xlu0 %376
    %v378 = vsel %vm187, %v363, 0.0
    %379 = vadd.xlane.f32.xlu0 %v378
    %v380 = vpop.xlane.xlu0 %379
    %v381 = vsel %vm187, %v368, 0.0
    %382 = vadd.xlane.f32.xlu0 %v381
    %v383 = vpop.xlane.xlu0 %382
    %v384 = vrcp.pop 32.0
    %v385 = vmul.f32 %v374, %v384
    %v386 = vmul.f32 %v377, %v384
    %v387 = vmul.f32 %v380, %v384
    %v388 = vmul.f32 %v383, %v384
    %v389 = vsub.f32 %v353, %v385
    %v390 = vsub.f32 %v358, %v386
    %v391 = vsub.f32 %v363, %v387
    %v392 = vsub.f32 %v368, %v388
    %v393 = vmul.f32 %v389, %v389
    %v394 = vmul.f32 %v390, %v390
    %v395 = vmul.f32 %v391, %v391
    %v396 = vmul.f32 %v392, %v392
    %v397 = vsel %vm187, %v393, 0.0
    %398 = vadd.xlane.f32.xlu0 %v397
    %v399 = vpop.xlane.xlu0 %398
    %v400 = vsel %vm187, %v394, 0.0
    %401 = vadd.xlane.f32.xlu0 %v400
    %v402 = vpop.xlane.xlu0 %401
    %v403 = vsel %vm187, %v395, 0.0
    %404 = vadd.xlane.f32.xlu0 %v403
    %v405 = vpop.xlane.xlu0 %404
    %v406 = vsel %vm187, %v396, 0.0
    %407 = vadd.xlane.f32.xlu0 %v406
    %v408 = vpop.xlane.xlu0 %407
    %v409 = vmul.f32 %v399, %v384
    %v410 = vmul.f32 %v402, %v384
    %v411 = vmul.f32 %v405, %v384
    %v412 = vmul.f32 %v408, %v384
    %v413 = vadd.f32 %v409, 1e-05
    %v414 = vadd.f32 %v410, 1e-05
    %v415 = vadd.f32 %v411, 1e-05
    %v416 = vadd.f32 %v412, 1e-05
    %v417 = vrsqrt.pop %v413
    %v418 = vrsqrt.pop %v414
    %v419 = vrsqrt.pop %v415
    %v420 = vrsqrt.pop %v416
    %v421 = vmul.f32 %v389, %v417
    %v422 = vmul.f32 %v390, %v418
    %v423 = vmul.f32 %v391, %v419
    %v424 = vmul.f32 %v392, %v420
    %v425 = vld [vmem:[%s4] sm:$0x1]
    %v427 = vlaneseq
    %v428 = vshrl.u32 %v427, 7
    %v429 = vsub.s32 0, %v428
    %v430 = vrot.slane %v425, %v429
    %v432 = vmul.f32 %v421, %v430
    %v433 = vmul.f32 %v422, %v430
    %v434 = vmul.f32 %v423, %v430
    %v435 = vmul.f32 %v424, %v430
    %v436 = vld [vmem:[%s5] sm:$0x1]
    %v438 = vlaneseq
    %v439 = vshrl.u32 %v438, 7
    %v440 = vsub.s32 0, %v439
    %v441 = vrot.slane %v436, %v440
    %v443 = vadd.f32 %v432, %v441
    %v444 = vadd.f32 %v433, %v441
    %v445 = vadd.f32 %v434, %v441
    %v446 = vadd.f32 %v435, %v441
    %vm447 = vcmp.ge.f32.partialorder %v443, 0.0
    %vm448 = vcmp.ge.f32.partialorder %v444, 0.0
    %vm449 = vcmp.ge.f32.partialorder %v445, 0.0
    %vm450 = vcmp.ge.f32.partialorder %v446, 0.0
    %v451 = vstv %s371
    %v452 = vmul.f32 %v451, %v443
    %v453 = vmul.f32 %v451, %v444
    %v454 = vmul.f32 %v451, %v445
    %v455 = vmul.f32 %v451, %v446
    %v456 = vsel %vm447, %v443, %v452
    %v457 = vsel %vm448, %v444, %v453
    %v458 = vsel %vm449, %v445, %v454
    %v459 = vsel %vm450, %v446, %v455
    %v460 = vadd.f32 %v456, %v157
    %v461 = vadd.f32 %v457, %v162
    %v462 = vadd.f32 %v458, %v167
    %v463 = vadd.f32 %v459, %v172
    %v464 = vpack.c.bf16 %v461, %v460
    %v465 = vpack.c.bf16 %v463, %v462
    %466 = vmatprep.subr.bf16.mxu0 0
    %467 = vmatpush1.bf16.msra.mxu0 %v464
    %468 = vmatprep.subr.bf16.mxu0 0
    %469 = vmatpush1.bf16.msra.mxu0 %v465
    %470 = vmatprep.subr.bf16.mxu0 0
    %471 = vmatpush1.bf16.msra.mxu0 0
    %472 = vmatprep.subr.bf16.mxu0 0
    %473 = vmatpush1.bf16.msra.mxu0 0
    %474 = vmatprep.subr.bf16.mxu0 0
    %475 = vmatpush1.bf16.msra.mxu0 0
    %476 = vmatprep.subr.bf16.mxu0 0
    %477 = vmatpush1.bf16.msra.mxu0 0
    %478 = vmatprep.subr.bf16.mxu0 0
    %479 = vmatpush1.bf16.msra.mxu0 0
    %480 = vmatprep.subr.bf16.mxu0 0
    %481 = vmatpush1.bf16.msra.mxu0 0
    %482 = vmatprep.subr.bf16.mxu0 0
    %483 = vmatpush1.bf16.msra.mxu0 0
    %484 = vmatprep.subr.bf16.mxu0 0
    %485 = vmatpush1.bf16.msra.mxu0 0
    %486 = vmatprep.subr.bf16.mxu0 0
    %487 = vmatpush1.bf16.msra.mxu0 0
    %488 = vmatprep.subr.bf16.mxu0 0
    %489 = vmatpush1.bf16.msra.mxu0 0
    %490 = vmatprep.subr.bf16.mxu0 0
    %491 = vmatpush1.bf16.msra.mxu0 0
    %492 = vmatprep.subr.bf16.mxu0 0
    %493 = vmatpush1.bf16.msra.mxu0 0
    %494 = vmatprep.subr.bf16.mxu0 0
    %495 = vmatpush1.bf16.msra.mxu0 0
    %496 = vmatprep.subr.bf16.mxu0 0
    %497 = vmatpush1.bf16.msra.mxu0 0
    %498 = vmatprep.mubr.bf16.mxu0 0
    %499 = vmatmul.mubr.bf16.gmra.mrb[0].mxu0 %v189
    %v500 = vpop.f32.mrb[0].mxu0
    %v501 = vadd.f32 0.0, %v500
    %v502 = vpop.f32.mrb[0].mxu0
    %v503 = vpop.f32.mrb[0].mxu0
    %v504 = vadd.f32 0.0, %v503
    %v505 = vpop.f32.mrb[0].mxu0
    %506 = vmatprep.mubr.bf16.mxu0 0
    %507 = vmatmul.mubr.bf16.gmra.mrb[0].mxu0 %v192
    %v508 = vpop.f32.mrb[0].mxu0
    %v509 = vadd.f32 0.0, %v508
    %v510 = vpop.f32.mrb[0].mxu0
    %v511 = vpop.f32.mrb[0].mxu0
    %v512 = vadd.f32 0.0, %v511
    %v513 = vpop.f32.mrb[0].mxu0
    %514 = vdwg.mxu0
    %519 = vrot.lane.b32.xlu0 %v501, 32
    %v520 = vpop.permute.xlu0 %519
    %521 = vrot.lane.b32.xlu0 %v504, 32
    %v522 = vpop.permute.xlu0 %521
    %523 = vrot.lane.b32.xlu0 %v509, 32
    %v524 = vpop.permute.xlu0 %523
    %525 = vrot.lane.b32.xlu0 %v512, 32
    %v526 = vpop.permute.xlu0 %525
    %v531 = vsel %vm187, %v460, %v520
    %v532 = vsel %vm187, %v461, %v522
    %v533 = vsel %vm187, %v462, %v524
    %v534 = vsel %vm187, %v463, %v526
    %v535 = vld [vmem:[%s6] sm:$0xff]
    %v536 = vld [vmem:[%s6 + $0x8] sm:$0xff]
    %v537 = vld [vmem:[%s6 + $0x10] sm:$0xff]
    %v538 = vld [vmem:[%s6 + $0x18] sm:$0xff]
    %v539 = vld [vmem:[%s6 + $0x20] sm:$0xff]
    %v540 = vld [vmem:[%s6 + $0x28] sm:$0xff]
    %v541 = vld [vmem:[%s6 + $0x30] sm:$0xff]
    %v542 = vld [vmem:[%s6 + $0x38] sm:$0xff]
    %v543 = vld [vmem:[%s7] sm:$0x1]
    %v545 = vlaneseq
    %v546 = vshrl.u32 %v545, 7
    %v547 = vsub.s32 0, %v546
    %v548 = vrot.slane %v543, %v547
    %vm550 = vcmask 523264
    %v552 = vsel %vm550, %v531, 0
    %v555 = vsel %vm550, %v532, 0
    %v558 = vsel %vm550, %v533, 0
    %v561 = vsel %vm550, %v534, 0
    %563 = vmatprep.subr.mxu0 0.0
    %564 = vmatpush1.msra.mxu0 %v535
    %565 = vmatprep.subr.mxu0 0.0
    %566 = vmatpush1.msra.mxu0 %v536
    %567 = vmatprep.subr.mxu0 0.0
    %568 = vmatpush1.msra.mxu0 %v537
    %569 = vmatprep.subr.mxu0 0.0
    %570 = vmatpush1.msra.mxu0 %v538
    %571 = vmatprep.subr.mxu0 0.0
    %572 = vmatpush1.msra.mxu0 %v539
    %573 = vmatprep.subr.mxu0 0.0
    %574 = vmatpush1.msra.mxu0 %v540
    %575 = vmatprep.subr.mxu0 0.0
    %576 = vmatpush1.msra.mxu0 %v541
    %577 = vmatprep.subr.mxu0 0.0
    %578 = vmatpush1.msra.mxu0 %v542
    %579 = vmatprep.subr.mxu0 0.0
    %580 = vmatpush1.msra.mxu0 0.0
    %581 = vmatprep.subr.mxu0 0.0
    %582 = vmatpush1.msra.mxu0 0.0
    %583 = vmatprep.subr.mxu0 0.0
    %584 = vmatpush1.msra.mxu0 0.0
    %585 = vmatprep.subr.mxu0 0.0
    %586 = vmatpush1.msra.mxu0 0.0
    %587 = vmatprep.subr.mxu0 0.0
    %588 = vmatpush1.msra.mxu0 0.0
    %589 = vmatprep.subr.mxu0 0.0
    %590 = vmatpush1.msra.mxu0 0.0
    %591 = vmatprep.subr.mxu0 0.0
    %592 = vmatpush1.msra.mxu0 0.0
    %593 = vmatprep.subr.mxu0 0.0
    %594 = vmatpush1.msra.mxu0 0.0
    %595 = vmatprep.subr.mxu0 0.0
    %596 = vmatpush1.msra.mxu0 0.0
    %597 = vmatprep.subr.mxu0 0.0
    %598 = vmatpush1.msra.mxu0 0.0
    %599 = vmatprep.subr.mxu0 0.0
    %600 = vmatpush1.msra.mxu0 0.0
    %601 = vmatprep.subr.mxu0 0.0
    %602 = vmatpush1.msra.mxu0 0.0
    %603 = vmatprep.subr.mxu0 0.0
    %604 = vmatpush1.msra.mxu0 0.0
    %605 = vmatprep.subr.mxu0 0.0
    %606 = vmatpush1.msra.mxu0 0.0
    %607 = vmatprep.subr.mxu0 0.0
    %608 = vmatpush1.msra.mxu0 0.0
    %609 = vmatprep.subr.mxu0 0.0
    %610 = vmatpush1.msra.mxu0 0.0
    %611 = vmatprep.subr.mxu0 0.0
    %612 = vmatpush1.msra.mxu0 0.0
    %613 = vmatprep.subr.mxu0 0.0
    %614 = vmatpush1.msra.mxu0 0.0
    %615 = vmatprep.subr.mxu0 0.0
    %616 = vmatpush1.msra.mxu0 0.0
    %617 = vmatprep.subr.mxu0 0.0
    %618 = vmatpush1.msra.mxu0 0.0
    %619 = vmatprep.subr.mxu0 0.0
    %620 = vmatpush1.msra.mxu0 0.0
    %621 = vmatprep.subr.mxu0 0.0
    %622 = vmatpush1.msra.mxu0 0.0
    %623 = vmatprep.subr.mxu0 0.0
    %624 = vmatpush1.msra.mxu0 0.0
    %625 = vmatprep.subr.mxu0 0.0
    %626 = vmatpush1.msra.mxu0 0.0
    %627 = vmatprep.mubr.f32.mxu0 0.0
    %628 = vmatmul.mubr.f32.gmra.mrb[0].mxu0 %v552
    %v629 = vpop.f32.mrb[0].mxu0
    %v630 = vadd.f32 %v548, %v629
    %v631 = vpop.f32.mrb[0].mxu0
    %632 = vmatprep.mubr.f32.mxu0 0.0
    %633 = vmatmul.mubr.f32.gmra.mrb[0].mxu0 %v555
    %v634 = vpop.f32.mrb[0].mxu0
    %v635 = vadd.f32 %v548, %v634
    %v636 = vpop.f32.mrb[0].mxu0
    %637 = vmatprep.mubr.f32.mxu0 0.0
    %638 = vmatmul.mubr.f32.gmra.mrb[0].mxu0 %v558
    %v639 = vpop.f32.mrb[0].mxu0
    %v640 = vadd.f32 %v548, %v639
    %v641 = vpop.f32.mrb[0].mxu0
    %642 = vmatprep.mubr.f32.mxu0 0.0
    %643 = vmatmul.mubr.f32.gmra.mrb[0].mxu0 %v561
    %v644 = vpop.f32.mrb[0].mxu0
    %v645 = vadd.f32 %v548, %v644
    %v646 = vpop.f32.mrb[0].mxu0
    %647 = vdwg.mxu0
    %s648 = sld [smem:[#allocation2 + $0x1]]
    %v649 = vsel %vm187, %v630, 0.0
    %650 = vadd.xlane.f32.xlu0 %v649
    %v651 = vpop.xlane.xlu0 %650
    %v652 = vsel %vm187, %v635, 0.0
    %653 = vadd.xlane.f32.xlu0 %v652
    %v654 = vpop.xlane.xlu0 %653
    %v655 = vsel %vm187, %v640, 0.0
    %656 = vadd.xlane.f32.xlu0 %v655
    %v657 = vpop.xlane.xlu0 %656
    %v658 = vsel %vm187, %v645, 0.0
    %659 = vadd.xlane.f32.xlu0 %v658
    %v660 = vpop.xlane.xlu0 %659
    %v661 = vmul.f32 %v651, %v384
    %v662 = vmul.f32 %v654, %v384
    %v663 = vmul.f32 %v657, %v384
    %v664 = vmul.f32 %v660, %v384
    %v665 = vsub.f32 %v630, %v661
    %v666 = vsub.f32 %v635, %v662
    %v667 = vsub.f32 %v640, %v663
    %v668 = vsub.f32 %v645, %v664
    %v669 = vmul.f32 %v665, %v665
    %v670 = vmul.f32 %v666, %v666
    %v671 = vmul.f32 %v667, %v667
    %v672 = vmul.f32 %v668, %v668
    %v673 = vsel %vm187, %v669, 0.0
    %674 = vadd.xlane.f32.xlu0 %v673
    %v675 = vpop.xlane.xlu0 %674
    %v676 = vsel %vm187, %v670, 0.0
    %677 = vadd.xlane.f32.xlu0 %v676
    %v678 = vpop.xlane.xlu0 %677
    %v679 = vsel %vm187, %v671, 0.0
    %680 = vadd.xlane.f32.xlu0 %v679
    %v681 = vpop.xlane.xlu0 %680
    %v682 = vsel %vm187, %v672, 0.0
    %683 = vadd.xlane.f32.xlu0 %v682
    %v684 = vpop.xlane.xlu0 %683
    %v685 = vmul.f32 %v675, %v384
    %v686 = vmul.f32 %v678, %v384
    %v687 = vmul.f32 %v681, %v384
    %v688 = vmul.f32 %v684, %v384
    %v689 = vadd.f32 %v685, 1e-05
    %v690 = vadd.f32 %v686, 1e-05
    %v691 = vadd.f32 %v687, 1e-05
    %v692 = vadd.f32 %v688, 1e-05
    %v693 = vrsqrt.pop %v689
    %v694 = vrsqrt.pop %v690
    %v695 = vrsqrt.pop %v691
    %v696 = vrsqrt.pop %v692
    %v697 = vmul.f32 %v665, %v693
    %v698 = vmul.f32 %v666, %v694
    %v699 = vmul.f32 %v667, %v695
    %v700 = vmul.f32 %v668, %v696
    %v701 = vld [vmem:[%s8] sm:$0x1]
    %v703 = vlaneseq
    %v704 = vshrl.u32 %v703, 7
    %v705 = vsub.s32 0, %v704
    %v706 = vrot.slane %v701, %v705
    %v708 = vmul.f32 %v697, %v706
    %v709 = vmul.f32 %v698, %v706
    %v710 = vmul.f32 %v699, %v706
    %v711 = vmul.f32 %v700, %v706
    %v712 = vld [vmem:[%s9] sm:$0x1]
    %v714 = vlaneseq
    %v715 = vshrl.u32 %v714, 7
    %v716 = vsub.s32 0, %v715
    %v717 = vrot.slane %v712, %v716
    %v719 = vadd.f32 %v708, %v717
    %v720 = vadd.f32 %v709, %v717
    %v721 = vadd.f32 %v710, %v717
    %v722 = vadd.f32 %v711, %v717
    %vm723 = vcmp.ge.f32.partialorder %v719, 0.0
    %vm724 = vcmp.ge.f32.partialorder %v720, 0.0
    %vm725 = vcmp.ge.f32.partialorder %v721, 0.0
    %vm726 = vcmp.ge.f32.partialorder %v722, 0.0
    %v727 = vstv %s648
    %v728 = vmul.f32 %v727, %v719
    %v729 = vmul.f32 %v727, %v720
    %v730 = vmul.f32 %v727, %v721
    %v731 = vmul.f32 %v727, %v722
    %v732 = vsel %vm723, %v719, %v728
    %v733 = vsel %vm724, %v720, %v729
    %v734 = vsel %vm725, %v721, %v730
    %v735 = vsel %vm726, %v722, %v731
    %v736 = vadd.f32 %v456, %v732
    %v737 = vadd.f32 %v457, %v733
    %v738 = vadd.f32 %v458, %v734
    %v739 = vadd.f32 %v459, %v735
    %744 = vrot.lane.b32.xlu0 %v157, 96
    %v745 = vpop.permute.xlu0 %744
    %746 = vrot.lane.b32.xlu0 %v162, 96
    %v747 = vpop.permute.xlu0 %746
    %748 = vrot.lane.b32.xlu0 %v167, 96
    %v749 = vpop.permute.xlu0 %748
    %750 = vrot.lane.b32.xlu0 %v172, 96
    %v751 = vpop.permute.xlu0 %750
    %v756 = vadd.f32 %v736, %v745
    %v757 = vadd.f32 %v737, %v747
    %v758 = vadd.f32 %v738, %v749
    %v759 = vadd.f32 %v739, %v751
    %v760 = vpack.c.bf16 %v757, %v756
    %v761 = vpack.c.bf16 %v759, %v758
    %762 = vmatprep.subr.bf16.mxu0 0
    %763 = vmatpush1.bf16.msra.mxu0 %v760
    %764 = vmatprep.subr.bf16.mxu0 0
    %765 = vmatpush1.bf16.msra.mxu0 %v761
    %766 = vmatprep.subr.bf16.mxu0 0
    %767 = vmatpush1.bf16.msra.mxu0 0
    %768 = vmatprep.subr.bf16.mxu0 0
    %769 = vmatpush1.bf16.msra.mxu0 0
    %770 = vmatprep.subr.bf16.mxu0 0
    %771 = vmatpush1.bf16.msra.mxu0 0
    %772 = vmatprep.subr.bf16.mxu0 0
    %773 = vmatpush1.bf16.msra.mxu0 0
    %774 = vmatprep.subr.bf16.mxu0 0
    %775 = vmatpush1.bf16.msra.mxu0 0
    %776 = vmatprep.subr.bf16.mxu0 0
    %777 = vmatpush1.bf16.msra.mxu0 0
    %778 = vmatprep.subr.bf16.mxu0 0
    %779 = vmatpush1.bf16.msra.mxu0 0
    %780 = vmatprep.subr.bf16.mxu0 0
    %781 = vmatpush1.bf16.msra.mxu0 0
    %782 = vmatprep.subr.bf16.mxu0 0
    %783 = vmatpush1.bf16.msra.mxu0 0
    %784 = vmatprep.subr.bf16.mxu0 0
    %785 = vmatpush1.bf16.msra.mxu0 0
    %786 = vmatprep.subr.bf16.mxu0 0
    %787 = vmatpush1.bf16.msra.mxu0 0
    %788 = vmatprep.subr.bf16.mxu0 0
    %789 = vmatpush1.bf16.msra.mxu0 0
    %790 = vmatprep.subr.bf16.mxu0 0
    %791 = vmatpush1.bf16.msra.mxu0 0
    %792 = vmatprep.subr.bf16.mxu0 0
    %793 = vmatpush1.bf16.msra.mxu0 0
    %794 = vmatprep.mubr.bf16.mxu0 0
    %795 = vmatmul.mubr.bf16.gmra.mrb[0].mxu0 %v189
    %v796 = vpop.f32.mrb[0].mxu0
    %v797 = vadd.f32 0.0, %v796
    %v798 = vpop.f32.mrb[0].mxu0
    %v799 = vpop.f32.mrb[0].mxu0
    %v800 = vadd.f32 0.0, %v799
    %v801 = vpop.f32.mrb[0].mxu0
    %802 = vmatprep.mubr.bf16.mxu0 0
    %803 = vmatmul.mubr.bf16.gmra.mrb[0].mxu0 %v192
    %v804 = vpop.f32.mrb[0].mxu0
    %v805 = vadd.f32 0.0, %v804
    %v806 = vpop.f32.mrb[0].mxu0
    %v807 = vpop.f32.mrb[0].mxu0
    %v808 = vadd.f32 0.0, %v807
    %v809 = vpop.f32.mrb[0].mxu0
    %810 = vdwg.mxu0
    %815 = vrot.lane.b32.xlu0 %v797, 32
    %v816 = vpop.permute.xlu0 %815
    %817 = vrot.lane.b32.xlu0 %v800, 32
    %v818 = vpop.permute.xlu0 %817
    %819 = vrot.lane.b32.xlu0 %v805, 32
    %v820 = vpop.permute.xlu0 %819
    %821 = vrot.lane.b32.xlu0 %v808, 32
    %v822 = vpop.permute.xlu0 %821
    %v827 = vsel %vm187, %v756, %v816
    %v828 = vsel %vm187, %v757, %v818
    %v829 = vsel %vm187, %v758, %v820
    %v830 = vsel %vm187, %v759, %v822
    %v831 = vld [vmem:[%s10] sm:$0xff]
    %v832 = vld [vmem:[%s10 + $0x8] sm:$0xff]
    %v833 = vld [vmem:[%s10 + $0x10] sm:$0xff]
    %v834 = vld [vmem:[%s10 + $0x18] sm:$0xff]
    %v835 = vld [vmem:[%s10 + $0x20] sm:$0xff]
    %v836 = vld [vmem:[%s10 + $0x28] sm:$0xff]
    %v837 = vld [vmem:[%s10 + $0x30] sm:$0xff]
    %v838 = vld [vmem:[%s10 + $0x38] sm:$0xff]
    %v839 = vld [vmem:[%s11] sm:$0x1]
    %v841 = vlaneseq
    %v842 = vshrl.u32 %v841, 7
    %v843 = vsub.s32 0, %v842
    %v844 = vrot.slane %v839, %v843
    %v847 = vsel %vm550, %v827, 0
    %v850 = vsel %vm550, %v828, 0
    %v853 = vsel %vm550, %v829, 0
    %v856 = vsel %vm550, %v830, 0
    %858 = vmatprep.subr.mxu0 0.0
    %859 = vmatpush1.msra.mxu0 %v831
    %860 = vmatprep.subr.mxu0 0.0
    %861 = vmatpush1.msra.mxu0 %v832
    %862 = vmatprep.subr.mxu0 0.0
    %863 = vmatpush1.msra.mxu0 %v833
    %864 = vmatprep.subr.mxu0 0.0
    %865 = vmatpush1.msra.mxu0 %v834
    %866 = vmatprep.subr.mxu0 0.0
    %867 = vmatpush1.msra.mxu0 %v835
    %868 = vmatprep.subr.mxu0 0.0
    %869 = vmatpush1.msra.mxu0 %v836
    %870 = vmatprep.subr.mxu0 0.0
    %871 = vmatpush1.msra.mxu0 %v837
    %872 = vmatprep.subr.mxu0 0.0
    %873 = vmatpush1.msra.mxu0 %v838
    %874 = vmatprep.subr.mxu0 0.0
    %875 = vmatpush1.msra.mxu0 0.0
    %876 = vmatprep.subr.mxu0 0.0
    %877 = vmatpush1.msra.mxu0 0.0
    %878 = vmatprep.subr.mxu0 0.0
    %879 = vmatpush1.msra.mxu0 0.0
    %880 = vmatprep.subr.mxu0 0.0
    %881 = vmatpush1.msra.mxu0 0.0
    %882 = vmatprep.subr.mxu0 0.0
    %883 = vmatpush1.msra.mxu0 0.0
    %884 = vmatprep.subr.mxu0 0.0
    %885 = vmatpush1.msra.mxu0 0.0
    %886 = vmatprep.subr.mxu0 0.0
    %887 = vmatpush1.msra.mxu0 0.0
    %888 = vmatprep.subr.mxu0 0.0
    %889 = vmatpush1.msra.mxu0 0.0
    %890 = vmatprep.subr.mxu0 0.0
    %891 = vmatpush1.msra.mxu0 0.0
    %892 = vmatprep.subr.mxu0 0.0
    %893 = vmatpush1.msra.mxu0 0.0
    %894 = vmatprep.subr.mxu0 0.0
    %895 = vmatpush1.msra.mxu0 0.0
    %896 = vmatprep.subr.mxu0 0.0
    %897 = vmatpush1.msra.mxu0 0.0
    %898 = vmatprep.subr.mxu0 0.0
    %899 = vmatpush1.msra.mxu0 0.0
    %900 = vmatprep.subr.mxu0 0.0
    %901 = vmatpush1.msra.mxu0 0.0
    %902 = vmatprep.subr.mxu0 0.0
    %903 = vmatpush1.msra.mxu0 0.0
    %904 = vmatprep.subr.mxu0 0.0
    %905 = vmatpush1.msra.mxu0 0.0
    %906 = vmatprep.subr.mxu0 0.0
    %907 = vmatpush1.msra.mxu0 0.0
    %908 = vmatprep.subr.mxu0 0.0
    %909 = vmatpush1.msra.mxu0 0.0
    %910 = vmatprep.subr.mxu0 0.0
    %911 = vmatpush1.msra.mxu0 0.0
    %912 = vmatprep.subr.mxu0 0.0
    %913 = vmatpush1.msra.mxu0 0.0
    %914 = vmatprep.subr.mxu0 0.0
    %915 = vmatpush1.msra.mxu0 0.0
    %916 = vmatprep.subr.mxu0 0.0
    %917 = vmatpush1.msra.mxu0 0.0
    %918 = vmatprep.subr.mxu0 0.0
    %919 = vmatpush1.msra.mxu0 0.0
    %920 = vmatprep.subr.mxu0 0.0
    %921 = vmatpush1.msra.mxu0 0.0
    %922 = vmatprep.mubr.f32.mxu0 0.0
    %923 = vmatmul.mubr.f32.gmra.mrb[0].mxu0 %v847
    %v924 = vpop.f32.mrb[0].mxu0
    %v925 = vadd.f32 %v844, %v924
    %v926 = vpop.f32.mrb[0].mxu0
    %927 = vmatprep.mubr.f32.mxu0 0.0
    %928 = vmatmul.mubr.f32.gmra.mrb[0].mxu0 %v850
    %v929 = vpop.f32.mrb[0].mxu0
    %v930 = vadd.f32 %v844, %v929
    %v931 = vpop.f32.mrb[0].mxu0
    %932 = vmatprep.mubr.f32.mxu0 0.0
    %933 = vmatmul.mubr.f32.gmra.mrb[0].mxu0 %v853
    %v934 = vpop.f32.mrb[0].mxu0
    %v935 = vadd.f32 %v844, %v934
    %v936 = vpop.f32.mrb[0].mxu0
    %937 = vmatprep.mubr.f32.mxu0 0.0
    %938 = vmatmul.mubr.f32.gmra.mrb[0].mxu0 %v856
    %v939 = vpop.f32.mrb[0].mxu0
    %v940 = vadd.f32 %v844, %v939
    %v941 = vpop.f32.mrb[0].mxu0
    %942 = vdwg.mxu0
    %s943 = sld [smem:[#allocation2 + $0x2]]
    %v944 = vsel %vm77, %v925, 0.0
    %945 = vadd.xlane.f32.xlu0 %v944
    %v946 = vpop.xlane.xlu0 %945
    %v947 = vsel %vm77, %v930, 0.0
    %948 = vadd.xlane.f32.xlu0 %v947
    %v949 = vpop.xlane.xlu0 %948
    %v950 = vsel %vm77, %v935, 0.0
    %951 = vadd.xlane.f32.xlu0 %v950
    %v952 = vpop.xlane.xlu0 %951
    %v953 = vsel %vm77, %v940, 0.0
    %954 = vadd.xlane.f32.xlu0 %v953
    %v955 = vpop.xlane.xlu0 %954
    %v956 = vrcp.pop 16.0
    %v957 = vmul.f32 %v946, %v956
    %v958 = vmul.f32 %v949, %v956
    %v959 = vmul.f32 %v952, %v956
    %v960 = vmul.f32 %v955, %v956
    %v961 = vsub.f32 %v925, %v957
    %v962 = vsub.f32 %v930, %v958
    %v963 = vsub.f32 %v935, %v959
    %v964 = vsub.f32 %v940, %v960
    %v965 = vmul.f32 %v961, %v961
    %v966 = vmul.f32 %v962, %v962
    %v967 = vmul.f32 %v963, %v963
    %v968 = vmul.f32 %v964, %v964
    %v969 = vsel %vm77, %v965, 0.0
    %970 = vadd.xlane.f32.xlu0 %v969
    %v971 = vpop.xlane.xlu0 %970
    %v972 = vsel %vm77, %v966, 0.0
    %973 = vadd.xlane.f32.xlu0 %v972
    %v974 = vpop.xlane.xlu0 %973
    %v975 = vsel %vm77, %v967, 0.0
    %976 = vadd.xlane.f32.xlu0 %v975
    %v977 = vpop.xlane.xlu0 %976
    %v978 = vsel %vm77, %v968, 0.0
    %979 = vadd.xlane.f32.xlu0 %v978
    %v980 = vpop.xlane.xlu0 %979
    %v981 = vmul.f32 %v971, %v956
    %v982 = vmul.f32 %v974, %v956
    %v983 = vmul.f32 %v977, %v956
    %v984 = vmul.f32 %v980, %v956
    %v985 = vadd.f32 %v981, 1e-05
    %v986 = vadd.f32 %v982, 1e-05
    %v987 = vadd.f32 %v983, 1e-05
    %v988 = vadd.f32 %v984, 1e-05
    %v989 = vrsqrt.pop %v985
    %v990 = vrsqrt.pop %v986
    %v991 = vrsqrt.pop %v987
    %v992 = vrsqrt.pop %v988
    %v993 = vmul.f32 %v961, %v989
    %v994 = vmul.f32 %v962, %v990
    %v995 = vmul.f32 %v963, %v991
    %v996 = vmul.f32 %v964, %v992
    %v997 = vld [vmem:[%s12] sm:$0x1]
    %v999 = vlaneseq
    %v1000 = vshrl.u32 %v999, 7
    %v1001 = vsub.s32 0, %v1000
    %v1002 = vrot.slane %v997, %v1001
    %v1004 = vmul.f32 %v993, %v1002
    %v1005 = vmul.f32 %v994, %v1002
    %v1006 = vmul.f32 %v995, %v1002
    %v1007 = vmul.f32 %v996, %v1002
    %v1008 = vld [vmem:[%s13] sm:$0x1]
    %v1010 = vlaneseq
    %v1011 = vshrl.u32 %v1010, 7
    %v1012 = vsub.s32 0, %v1011
    %v1013 = vrot.slane %v1008, %v1012
    %v1015 = vadd.f32 %v1004, %v1013
    %v1016 = vadd.f32 %v1005, %v1013
    %v1017 = vadd.f32 %v1006, %v1013
    %v1018 = vadd.f32 %v1007, %v1013
    %vm1019 = vcmp.ge.f32.partialorder %v1015, 0.0
    %vm1020 = vcmp.ge.f32.partialorder %v1016, 0.0
    %vm1021 = vcmp.ge.f32.partialorder %v1017, 0.0
    %vm1022 = vcmp.ge.f32.partialorder %v1018, 0.0
    %v1023 = vstv %s943
    %v1024 = vmul.f32 %v1023, %v1015
    %v1025 = vmul.f32 %v1023, %v1016
    %v1026 = vmul.f32 %v1023, %v1017
    %v1027 = vmul.f32 %v1023, %v1018
    %v1028 = vsel %vm1019, %v1015, %v1024
    %v1029 = vsel %vm1020, %v1016, %v1025
    %v1030 = vsel %vm1021, %v1017, %v1026
    %v1031 = vsel %vm1022, %v1018, %v1027
    %1032 = vst.msk [vmem:[%s16] sm:$0xff] %vm77, %v1028
    %1033 = vst.msk [vmem:[%s16 + $0x8] sm:$0xff] %vm77, %v1029
    %1034 = vst.msk [vmem:[%s16 + $0x10] sm:$0xff] %vm77, %v1030
    %1035 = vst.msk [vmem:[%s16 + $0x18] sm:$0xff] %vm77, %v1031
    // Predicated region
    $region70: #{graphsage_gcn_forward.1} parent=1 // pred_check
      _
    $region71: #{graphsage_gcn_forward.1} parent=1 // pred_check_branch
      %1037 = sbr.rel (0) target = $region73
    $region72: #{graphsage_gcn_forward.1} parent=1 // pred_region
      _
    $region73: #{graphsage_gcn_forward.1} parent=1 // pred_fallthru
      _
    // Predicated region
    $region74: #{graphsage_gcn_forward.1} parent=1 // pred_check
      _
    $region75: #{graphsage_gcn_forward.1} parent=1 // pred_check_branch
      %1039 = sbr.rel (0) target = $region77
    $region76: #{graphsage_gcn_forward.1} parent=1 // pred_region
      _
    $region77: #{graphsage_gcn_forward.1} parent=1 // pred_fallthru
      _
    %1040 = vsyncpa [#allocation3], 1

</llo_original>
